<compile_context>
chip_gen: v6e
topology: v6e:2x2x1
jax: 0.10.0
libtpu: 0.0.40
codegen_flags: <defaults>
</compile_context>

<pallas_src>
import functools
import math

import jax
import jax.numpy as jnp
from jax.experimental import pallas as pl
from jax.experimental.pallas import tpu as pltpu


# ReLU pattern of one branch AFTER the shared_coder -> decoder[0] fold:
# encoder (relu, relu) -> folded shared+dec0 (relu) -> dec1 (relu) -> dec2 (linear).
_BRANCH_RELU = (True, True, True, True, False)


# ----------------------------------------------------------------------------
# Fused kernel: chain all layers of a branch over one (C, THW) lane-dense tile.
#   refs = [x_ref, w0, b0, w1, b1, ..., w{L-1}, b{L-1}, o_ref]
#   x_ref: (Cin0, THW) f32, w_l: (Cout_l, Cin_l) bf16, b_l: (Cout_l, 1) f32,
#   o_ref: (Cout_last, THW) f32.
# ----------------------------------------------------------------------------
def _fused_stack_kernel(*refs, n_layers, relu_flags, chunk, n_chunks):
    x_ref = refs[0]
    o_ref = refs[-1]
    # Weights / biases: loaded once per tile, reused across all lane sub-chunks.
    ws = [refs[1 + 2 * l][...] for l in range(n_layers)]
    bs = [refs[2 + 2 * l][...] for l in range(n_layers)]

    def process(off):
        h = x_ref[:, pl.ds(off, chunk)].astype(jnp.bfloat16)
        for l in range(n_layers):
            acc = jnp.dot(ws[l], h, preferred_element_type=jnp.float32) + bs[l]
            if relu_flags[l]:                       # static Python bool
                acc = jnp.maximum(acc, 0.0)
            if l + 1 < n_layers:
                h = acc.astype(jnp.bfloat16)        # bf16 feed for the next MXU pass
            else:
                o_ref[:, pl.ds(off, chunk)] = acc.astype(o_ref.dtype)

    if n_chunks == 1:
        process(0)
    else:
        # Keep the whole layer chain for one lane sub-chunk in vregs (no VMEM
        # spills of the activation at every layer boundary).
        @pl.loop(0, n_chunks, unroll=True)
        def _(i):
            process(pl.multiple_of(i * chunk, chunk))


def fused_conv1x1_stack(x_nchw, layers, relu_flags, *, thw_target=2048):
    """Apply a whole stack of fused 1x1-conv layers in a single pallas_call.

    x_nchw: (N, Cin, H, W) f32.
    layers: list of {"w": (Cout, Cin) bf16 BN-folded weight, "b": (Cout, 1) f32 bias}.
    relu_flags: static tuple of Python bools, one per layer.
    Returns (N, Cout_last, H, W) f32.
    """
    N, C, H, W = x_nchw.shape
    NHW = N * H * W
    assert C == layers[0]["w"].shape[1]
    assert len(relu_flags) == len(layers)
    cout_last = layers[-1]["w"].shape[0]
    n_layers = len(layers)

    # Fold the batch into the pixel/lane axis -> lane-dense tiles and stores.
    x2 = jnp.transpose(x_nchw, (1, 0, 2, 3)).reshape(C, NHW)

    # VMEM-budgeted tile size (conservative, fits the default scoped VMEM limit on
    # v5e/v6e/v7x): double-buffered f32 I/O + live f32 intermediates per lane.
    c_mid = max(max(l["w"].shape) for l in layers)
    per_lane_bytes = 4 * (2 * C + 2 * cout_last + 3 * c_mid)
    vmem_budget = 12 * 1024 * 1024
    thw_cap = max(128, min(thw_target, (vmem_budget // per_lane_bytes) // 128 * 128))

    if NHW <= thw_cap:
        thw = NHW                                   # full extent: no pad, no masking req
        nhw_pad = NHW
    else:
        thw = None
        for cand in range(thw_cap, 127, -128):      # prefer a divisor -> no pad/slice
            if NHW % cand == 0:
                thw = cand
                break
        if thw is None:
            thw = thw_cap
        nhw_pad = pl.cdiv(NHW, thw) * thw
        if nhw_pad != NHW:
            x2 = jnp.pad(x2, ((0, 0), (0, nhw_pad - NHW)))

    # Lane sub-chunk inside the kernel (<=512 lanes) so activations stay in vregs.
    chunk = thw
    for cand in (512, 256):
        if thw > cand and thw % cand == 0:
            chunk = cand
            break
    n_chunks = thw // chunk

    kern = functools.partial(
        _fused_stack_kernel,
        n_layers=n_layers,
        relu_flags=tuple(bool(r) for r in relu_flags),
        chunk=chunk,
        n_chunks=n_chunks,
    )

    in_specs = [pl.BlockSpec((C, thw), lambda t: (0, t))]
    args = [x2]
    for lyr in layers:
        co, ci = lyr["w"].shape
        # Weights / biases: full blocks, constant index_map -> VMEM-resident.
        in_specs.append(pl.BlockSpec((co, ci), lambda t: (0, 0)))
        in_specs.append(pl.BlockSpec((co, 1), lambda t: (0, 0)))
        args.append(lyr["w"])
        args.append(lyr["b"])

    out = pl.pallas_call(
        kern,
        out_shape=jax.ShapeDtypeStruct((cout_last, nhw_pad), jnp.float32),
        grid_spec=pltpu.PrefetchScalarGridSpec(
            num_scalar_prefetch=0,
            grid=(nhw_pad // thw,),
            in_specs=in_specs,
            out_specs=pl.BlockSpec((cout_last, thw), lambda t: (0, t)),
        ),
        compiler_params=pltpu.CompilerParams(
            dimension_semantics=("parallel",)),
    )(*args)

    if nhw_pad != NHW:
        out = out[:, :NHW]
    return jnp.transpose(out.reshape(cout_last, N, H, W), (1, 0, 2, 3))


# ----------------------------------------------------------------------------
# Parameter construction (deterministic, synthetic).  BN (eval mode) is folded:
# the per-output-channel scale goes into the weight, bias absorbs the rest.
# ----------------------------------------------------------------------------
def _make_layer(key, cin, cout, bn, eps=1e-5):
    ks = jax.random.split(key, 6)
    # Conv2d 1x1 weight, stored pre-transposed as (cout, cin) for w @ x.
    w = jax.random.normal(ks[0], (cout, cin), jnp.float32) * (1.0 / math.sqrt(cin))
    conv_b = jax.random.normal(ks[1], (cout,), jnp.float32) * 0.05
    if bn:
        gamma = jax.random.uniform(ks[2], (cout,), jnp.float32, 0.5, 1.5)
        beta = jax.random.normal(ks[3], (cout,), jnp.float32) * 0.1
        rmean = jax.random.normal(ks[4], (cout,), jnp.float32) * 0.1
        rvar = jax.random.uniform(ks[5], (cout,), jnp.float32, 0.5, 1.5)
        scale = gamma / jnp.sqrt(rvar + eps)
        bias = (conv_b - rmean) * scale + beta
    else:
        scale = jnp.ones((cout,), jnp.float32)
        bias = conv_b
    return {"w": w * scale[:, None], "b": bias.reshape(cout, 1)}


def make_dual_projection_params(key, in_dim, out_dim, latent_dim):
    L = latent_dim
    specs = [
        ("encoder1", [(in_dim, in_dim // 2 + L, True),
                      (in_dim // 2 + L, 2 * L, True)]),
        ("shared_coder", [(2 * L, L, False)]),
        ("decoder1", [(L, 2 * L, True),
                      (2 * L, out_dim // 2 + L, True),
                      (out_dim // 2 + L, out_dim, False)]),
        ("encoder2", [(out_dim, out_dim // 2 + L, True),
                      (out_dim // 2 + L, 2 * L, True)]),
        ("decoder2", [(L, 2 * L, True),
                      (2 * L, in_dim // 2 + L, True),
                      (in_dim // 2 + L, in_dim, False)]),
    ]
    params = {}
    for si, (name, layers) in enumerate(specs):
        keys = jax.random.split(jax.random.fold_in(key, si), len(layers))
        params[name] = [_make_layer(k, cin, cout, bn)
                        for k, (cin, cout, bn) in zip(keys, layers)]
    return params


def build_branches(params):
    """Assemble per-branch layer lists: fold the (linear, no-ReLU) shared_coder into
    each decoder's first (BN-folded) layer — exact: W' = Wd0 @ Wsc, b' = Wd0 @ bsc + bd0
    — then cast weights to bf16 for the MXU (biases stay f32)."""
    def fold(first, second):
        return {"w": second["w"] @ first["w"],
                "b": second["w"] @ first["b"] + second["b"]}

    def to_bf16(layers):
        return [{"w": l["w"].astype(jnp.bfloat16), "b": l["b"]} for l in layers]

    sc = params["shared_coder"][0]
    branch1 = to_bf16(params["encoder1"]
                      + [fold(sc, params["decoder1"][0])]
                      + params["decoder1"][1:])
    branch2 = to_bf16(params["encoder2"]
                      + [fold(sc, params["decoder2"][0])]
                      + params["decoder2"][1:])
    return branch1, branch2


# ----------------------------------------------------------------------------
# Forward pass: one fused pallas_call per branch.
# ----------------------------------------------------------------------------
def dual_projection_net(params, xs, xt):
    """xs, xt: (N, C, H, W) float32. Returns (xs_hat, xt_hat), each NCHW."""
    branch1, branch2 = build_branches(params)
    xt_hat = fused_conv1x1_stack(xs, branch1, _BRANCH_RELU)
    xs_hat = fused_conv1x1_stack(xt, branch2, _BRANCH_RELU)
    return xs_hat, xt_hat


# Pure-JAX reference (same folded params, same bf16 matmul / f32 accumulate math).
def _ref_forward(params, xs, xt):
    branch1, branch2 = build_branches(params)

    def stack(x, layers):
        n, c, hh, ww = x.shape
        h = x.reshape(n, c, hh * ww)
        for lyr, r in zip(layers, _BRANCH_RELU):
            acc = jnp.einsum("oi,nip->nop",
                             lyr["w"], h.astype(jnp.bfloat16),
                             preferred_element_type=jnp.float32) + lyr["b"][None]
            if r:
                acc = jnp.maximum(acc, 0.0)
            h = acc
        return h.reshape(n, h.shape[1], hh, ww)

    xt_hat = stack(xs, branch1)
    xs_hat = stack(xt, branch2)
    return xs_hat, xt_hat


if __name__ == "__main__":
    # Small, shape-consistent config: in_dim = out_dim = 32, latent_dim = 16.
    IN_DIM, OUT_DIM, LATENT = 32, 32, 16
    N, H, W = 2, 16, 16          # N*H*W = 512 -> lane-dense single tile, no padding

    key = jax.random.PRNGKey(0)
    k_params, k_xs, k_xt = jax.random.split(key, 3)

    params = make_dual_projection_params(k_params, IN_DIM, OUT_DIM, LATENT)
    xs = jax.random.normal(k_xs, (N, IN_DIM, H, W), jnp.float32)
    xt = jax.random.normal(k_xt, (N, OUT_DIM, H, W), jnp.float32)

    xs_hat, xt_hat = jax.jit(dual_projection_net)(params, xs, xt)
    jax.block_until_ready((xs_hat, xt_hat))

    xs_ref, xt_ref = _ref_forward(params, xs, xt)
    assert xs_hat.shape == (N, IN_DIM, H, W)
    assert xt_hat.shape == (N, OUT_DIM, H, W)
    assert jnp.allclose(xs_hat, xs_ref, atol=1e-3, rtol=1e-3), \
        float(jnp.max(jnp.abs(xs_hat - xs_ref)))
    assert jnp.allclose(xt_hat, xt_ref, atol=1e-3, rtol=1e-3), \
        float(jnp.max(jnp.abs(xt_hat - xt_ref)))

    print("KERNEL_OK")
</pallas_src>

<mosaic_0001>
module attributes {stable_mosaic.version = 11 : i64} {
  func.func @_fused_stack_kernel(%arg0: i32, %arg1: memref<32x512xf32, #tpu.memory_space<vmem>>, %arg2: memref<32x32xbf16, #tpu.memory_space<vmem>>, %arg3: memref<32x1xf32, #tpu.memory_space<vmem>>, %arg4: memref<32x32xbf16, #tpu.memory_space<vmem>>, %arg5: memref<32x1xf32, #tpu.memory_space<vmem>>, %arg6: memref<32x32xbf16, #tpu.memory_space<vmem>>, %arg7: memref<32x1xf32, #tpu.memory_space<vmem>>, %arg8: memref<32x32xbf16, #tpu.memory_space<vmem>>, %arg9: memref<32x1xf32, #tpu.memory_space<vmem>>, %arg10: memref<32x32xbf16, #tpu.memory_space<vmem>>, %arg11: memref<32x1xf32, #tpu.memory_space<vmem>>, %arg12: memref<32x512xf32, #tpu.memory_space<vmem>>) attributes {dimension_semantics = [#tpu.dimension_semantics<parallel>], iteration_bounds = array<i64: 1>, scalar_prefetch = 0 : i64, scratch_operands = 0 : i64, tpu.core_type = #tpu.core_type<tc>, window_params = [{transform_indices = @transform_0, window_bounds = array<i64: 32, 512>}, {pipeline_mode = #tpu.pipeline_mode<synchronous>, transform_indices = @transform_1, window_bounds = array<i64: 32, 32>}, {pipeline_mode = #tpu.pipeline_mode<synchronous>, transform_indices = @transform_2, window_bounds = array<i64: 32, 1>}, {pipeline_mode = #tpu.pipeline_mode<synchronous>, transform_indices = @transform_3, window_bounds = array<i64: 32, 32>}, {pipeline_mode = #tpu.pipeline_mode<synchronous>, transform_indices = @transform_4, window_bounds = array<i64: 32, 1>}, {pipeline_mode = #tpu.pipeline_mode<synchronous>, transform_indices = @transform_5, window_bounds = array<i64: 32, 32>}, {pipeline_mode = #tpu.pipeline_mode<synchronous>, transform_indices = @transform_6, window_bounds = array<i64: 32, 1>}, {pipeline_mode = #tpu.pipeline_mode<synchronous>, transform_indices = @transform_7, window_bounds = array<i64: 32, 32>}, {pipeline_mode = #tpu.pipeline_mode<synchronous>, transform_indices = @transform_8, window_bounds = array<i64: 32, 1>}, {pipeline_mode = #tpu.pipeline_mode<synchronous>, transform_indices = @transform_9, window_bounds = array<i64: 32, 32>}, {pipeline_mode = #tpu.pipeline_mode<synchronous>, transform_indices = @transform_10, window_bounds = array<i64: 32, 1>}, {transform_indices = @transform_11, window_bounds = array<i64: 32, 512>}]} {
    %c0 = arith.constant 0 : index
    %c0_0 = arith.constant 0 : index
    %0 = vector.load %arg2[%c0, %c0_0] : memref<32x32xbf16, #tpu.memory_space<vmem>>, vector<32x32xbf16>
    %c0_1 = arith.constant 0 : index
    %c0_2 = arith.constant 0 : index
    %1 = vector.load %arg4[%c0_1, %c0_2] : memref<32x32xbf16, #tpu.memory_space<vmem>>, vector<32x32xbf16>
    %c0_3 = arith.constant 0 : index
    %c0_4 = arith.constant 0 : index
    %2 = vector.load %arg6[%c0_3, %c0_4] : memref<32x32xbf16, #tpu.memory_space<vmem>>, vector<32x32xbf16>
    %c0_5 = arith.constant 0 : index
    %c0_6 = arith.constant 0 : index
    %3 = vector.load %arg8[%c0_5, %c0_6] : memref<32x32xbf16, #tpu.memory_space<vmem>>, vector<32x32xbf16>
    %c0_7 = arith.constant 0 : index
    %c0_8 = arith.constant 0 : index
    %4 = vector.load %arg10[%c0_7, %c0_8] : memref<32x32xbf16, #tpu.memory_space<vmem>>, vector<32x32xbf16>
    %c0_9 = arith.constant 0 : index
    %c0_10 = arith.constant 0 : index
    %5 = vector.load %arg3[%c0_9, %c0_10] : memref<32x1xf32, #tpu.memory_space<vmem>>, vector<32x1xf32>
    %c0_11 = arith.constant 0 : index
    %c0_12 = arith.constant 0 : index
    %6 = vector.load %arg5[%c0_11, %c0_12] : memref<32x1xf32, #tpu.memory_space<vmem>>, vector<32x1xf32>
    %c0_13 = arith.constant 0 : index
    %c0_14 = arith.constant 0 : index
    %7 = vector.load %arg7[%c0_13, %c0_14] : memref<32x1xf32, #tpu.memory_space<vmem>>, vector<32x1xf32>
    %c0_15 = arith.constant 0 : index
    %c0_16 = arith.constant 0 : index
    %8 = vector.load %arg9[%c0_15, %c0_16] : memref<32x1xf32, #tpu.memory_space<vmem>>, vector<32x1xf32>
    %c0_17 = arith.constant 0 : index
    %c0_18 = arith.constant 0 : index
    %9 = vector.load %arg11[%c0_17, %c0_18] : memref<32x1xf32, #tpu.memory_space<vmem>>, vector<32x1xf32>
    %c0_i32 = arith.constant 0 : i32
    %c1_i32 = arith.constant 1 : i32
    %10 = arith.muli %c0_i32, %c1_i32 : i32
    %c0_i32_19 = arith.constant 0 : i32
    %11 = arith.addi %c0_i32_19, %10 : i32
    %c256_i32 = arith.constant 256 : i32
    %12 = arith.muli %11, %c256_i32 : i32
    %13 = tpu.assume_multiple %12, 256 : i32
    %c0_20 = arith.constant 0 : index
    %14 = arith.index_cast %13 : i32 to index
    %15 = vector.load %arg1[%c0_20, %14] : memref<32x512xf32, #tpu.memory_space<vmem>>, vector<32x256xf32>
    %16 = arith.truncf %15 : vector<32x256xf32> to vector<32x256xbf16>
    %cst = arith.constant dense<0.000000e+00> : vector<32x256xf32>
    %17 = tpu.matmul %0, %16, %cst {dimension_numbers = #tpu.dot_dimension_numbers<[1], [0], [0], [1], [0, 0, 1, 1], [], []>} : vector<32x32xbf16>, vector<32x256xbf16>, vector<32x256xf32> -> vector<32x256xf32>
    %18 = vector.broadcast %5 : vector<32x1xf32> to vector<32x256xf32>
    %19 = arith.addf %17, %18 : vector<32x256xf32>
    %cst_21 = arith.constant 0.000000e+00 : f32
    %20 = vector.broadcast %cst_21 : f32 to vector<32x256xf32>
    %21 = arith.maximumf %19, %20 : vector<32x256xf32>
    %22 = arith.truncf %21 : vector<32x256xf32> to vector<32x256xbf16>
    %cst_22 = arith.constant dense<0.000000e+00> : vector<32x256xf32>
    %23 = tpu.matmul %1, %22, %cst_22 {dimension_numbers = #tpu.dot_dimension_numbers<[1], [0], [0], [1], [0, 0, 1, 1], [], []>} : vector<32x32xbf16>, vector<32x256xbf16>, vector<32x256xf32> -> vector<32x256xf32>
    %24 = vector.broadcast %6 : vector<32x1xf32> to vector<32x256xf32>
    %25 = arith.addf %23, %24 : vector<32x256xf32>
    %cst_23 = arith.constant 0.000000e+00 : f32
    %26 = vector.broadcast %cst_23 : f32 to vector<32x256xf32>
    %27 = arith.maximumf %25, %26 : vector<32x256xf32>
    %28 = arith.truncf %27 : vector<32x256xf32> to vector<32x256xbf16>
    %cst_24 = arith.constant dense<0.000000e+00> : vector<32x256xf32>
    %29 = tpu.matmul %2, %28, %cst_24 {dimension_numbers = #tpu.dot_dimension_numbers<[1], [0], [0], [1], [0, 0, 1, 1], [], []>} : vector<32x32xbf16>, vector<32x256xbf16>, vector<32x256xf32> -> vector<32x256xf32>
    %30 = vector.broadcast %7 : vector<32x1xf32> to vector<32x256xf32>
    %31 = arith.addf %29, %30 : vector<32x256xf32>
    %cst_25 = arith.constant 0.000000e+00 : f32
    %32 = vector.broadcast %cst_25 : f32 to vector<32x256xf32>
    %33 = arith.maximumf %31, %32 : vector<32x256xf32>
    %34 = arith.truncf %33 : vector<32x256xf32> to vector<32x256xbf16>
    %cst_26 = arith.constant dense<0.000000e+00> : vector<32x256xf32>
    %35 = tpu.matmul %3, %34, %cst_26 {dimension_numbers = #tpu.dot_dimension_numbers<[1], [0], [0], [1], [0, 0, 1, 1], [], []>} : vector<32x32xbf16>, vector<32x256xbf16>, vector<32x256xf32> -> vector<32x256xf32>
    %36 = vector.broadcast %8 : vector<32x1xf32> to vector<32x256xf32>
    %37 = arith.addf %35, %36 : vector<32x256xf32>
    %cst_27 = arith.constant 0.000000e+00 : f32
    %38 = vector.broadcast %cst_27 : f32 to vector<32x256xf32>
    %39 = arith.maximumf %37, %38 : vector<32x256xf32>
    %40 = arith.truncf %39 : vector<32x256xf32> to vector<32x256xbf16>
    %cst_28 = arith.constant dense<0.000000e+00> : vector<32x256xf32>
    %41 = tpu.matmul %4, %40, %cst_28 {dimension_numbers = #tpu.dot_dimension_numbers<[1], [0], [0], [1], [0, 0, 1, 1], [], []>} : vector<32x32xbf16>, vector<32x256xbf16>, vector<32x256xf32> -> vector<32x256xf32>
    %42 = vector.broadcast %9 : vector<32x1xf32> to vector<32x256xf32>
    %43 = arith.addf %41, %42 : vector<32x256xf32>
    %c0_29 = arith.constant 0 : index
    %44 = arith.index_cast %13 : i32 to index
    %45 = vector.load %arg12[%c0_29, %44] : memref<32x512xf32, #tpu.memory_space<vmem>>, vector<32x256xf32>
    tpu.vector_store %arg12[%c0_29, %44], %43 {strides = array<i32>} : memref<32x512xf32, #tpu.memory_space<vmem>>, vector<32x256xf32>,
    %c1_i32_30 = arith.constant 1 : i32
    %c1_i32_31 = arith.constant 1 : i32
    %46 = arith.muli %c1_i32_30, %c1_i32_31 : i32
    %c0_i32_32 = arith.constant 0 : i32
    %47 = arith.addi %c0_i32_32, %46 : i32
    %c256_i32_33 = arith.constant 256 : i32
    %48 = arith.muli %47, %c256_i32_33 : i32
    %49 = tpu.assume_multiple %48, 256 : i32
    %c0_34 = arith.constant 0 : index
    %50 = arith.index_cast %49 : i32 to index
    %51 = vector.load %arg1[%c0_34, %50] : memref<32x512xf32, #tpu.memory_space<vmem>>, vector<32x256xf32>
    %52 = arith.truncf %51 : vector<32x256xf32> to vector<32x256xbf16>
    %cst_35 = arith.constant dense<0.000000e+00> : vector<32x256xf32>
    %53 = tpu.matmul %0, %52, %cst_35 {dimension_numbers = #tpu.dot_dimension_numbers<[1], [0], [0], [1], [0, 0, 1, 1], [], []>} : vector<32x32xbf16>, vector<32x256xbf16>, vector<32x256xf32> -> vector<32x256xf32>
    %54 = vector.broadcast %5 : vector<32x1xf32> to vector<32x256xf32>
    %55 = arith.addf %53, %54 : vector<32x256xf32>
    %cst_36 = arith.constant 0.000000e+00 : f32
    %56 = vector.broadcast %cst_36 : f32 to vector<32x256xf32>
    %57 = arith.maximumf %55, %56 : vector<32x256xf32>
    %58 = arith.truncf %57 : vector<32x256xf32> to vector<32x256xbf16>
    %cst_37 = arith.constant dense<0.000000e+00> : vector<32x256xf32>
    %59 = tpu.matmul %1, %58, %cst_37 {dimension_numbers = #tpu.dot_dimension_numbers<[1], [0], [0], [1], [0, 0, 1, 1], [], []>} : vector<32x32xbf16>, vector<32x256xbf16>, vector<32x256xf32> -> vector<32x256xf32>
    %60 = vector.broadcast %6 : vector<32x1xf32> to vector<32x256xf32>
    %61 = arith.addf %59, %60 : vector<32x256xf32>
    %cst_38 = arith.constant 0.000000e+00 : f32
    %62 = vector.broadcast %cst_38 : f32 to vector<32x256xf32>
    %63 = arith.maximumf %61, %62 : vector<32x256xf32>
    %64 = arith.truncf %63 : vector<32x256xf32> to vector<32x256xbf16>
    %cst_39 = arith.constant dense<0.000000e+00> : vector<32x256xf32>
    %65 = tpu.matmul %2, %64, %cst_39 {dimension_numbers = #tpu.dot_dimension_numbers<[1], [0], [0], [1], [0, 0, 1, 1], [], []>} : vector<32x32xbf16>, vector<32x256xbf16>, vector<32x256xf32> -> vector<32x256xf32>
    %66 = vector.broadcast %7 : vector<32x1xf32> to vector<32x256xf32>
    %67 = arith.addf %65, %66 : vector<32x256xf32>
    %cst_40 = arith.constant 0.000000e+00 : f32
    %68 = vector.broadcast %cst_40 : f32 to vector<32x256xf32>
    %69 = arith.maximumf %67, %68 : vector<32x256xf32>
    %70 = arith.truncf %69 : vector<32x256xf32> to vector<32x256xbf16>
    %cst_41 = arith.constant dense<0.000000e+00> : vector<32x256xf32>
    %71 = tpu.matmul %3, %70, %cst_41 {dimension_numbers = #tpu.dot_dimension_numbers<[1], [0], [0], [1], [0, 0, 1, 1], [], []>} : vector<32x32xbf16>, vector<32x256xbf16>, vector<32x256xf32> -> vector<32x256xf32>
    %72 = vector.broadcast %8 : vector<32x1xf32> to vector<32x256xf32>
    %73 = arith.addf %71, %72 : vector<32x256xf32>
    %cst_42 = arith.constant 0.000000e+00 : f32
    %74 = vector.broadcast %cst_42 : f32 to vector<32x256xf32>
    %75 = arith.maximumf %73, %74 : vector<32x256xf32>
    %76 = arith.truncf %75 : vector<32x256xf32> to vector<32x256xbf16>
    %cst_43 = arith.constant dense<0.000000e+00> : vector<32x256xf32>
    %77 = tpu.matmul %4, %76, %cst_43 {dimension_numbers = #tpu.dot_dimension_numbers<[1], [0], [0], [1], [0, 0, 1, 1], [], []>} : vector<32x32xbf16>, vector<32x256xbf16>, vector<32x256xf32> -> vector<32x256xf32>
    %78 = vector.broadcast %9 : vector<32x1xf32> to vector<32x256xf32>
    %79 = arith.addf %77, %78 : vector<32x256xf32>
    %c0_44 = arith.constant 0 : index
    %80 = arith.index_cast %49 : i32 to index
    %81 = vector.load %arg12[%c0_44, %80] : memref<32x512xf32, #tpu.memory_space<vmem>>, vector<32x256xf32>
    tpu.vector_store %arg12[%c0_44, %80], %79 {strides = array<i32>} : memref<32x512xf32, #tpu.memory_space<vmem>>, vector<32x256xf32>,
    %c2_i32 = arith.constant 2 : i32
    return
  }
  func.func @transform_0(%arg0: i32) -> (i32, i32) {
    %c0_i32 = arith.constant 0 : i32
    %c0_i32_0 = arith.constant 0 : i32
    return %c0_i32, %arg0 : i32, i32
  }
  func.func @transform_1(%arg0: i32) -> (i32, i32) {
    %c0_i32 = arith.constant 0 : i32
    %c0_i32_0 = arith.constant 0 : i32
    %c0_i32_1 = arith.constant 0 : i32
    return %c0_i32, %c0_i32_0 : i32, i32
  }
  func.func @transform_2(%arg0: i32) -> (i32, i32) {
    %c0_i32 = arith.constant 0 : i32
    %c0_i32_0 = arith.constant 0 : i32
    %c0_i32_1 = arith.constant 0 : i32
    return %c0_i32, %c0_i32_0 : i32, i32
  }
  func.func @transform_3(%arg0: i32) -> (i32, i32) {
    %c0_i32 = arith.constant 0 : i32
    %c0_i32_0 = arith.constant 0 : i32
    %c0_i32_1 = arith.constant 0 : i32
    return %c0_i32, %c0_i32_0 : i32, i32
  }
  func.func @transform_4(%arg0: i32) -> (i32, i32) {
    %c0_i32 = arith.constant 0 : i32
    %c0_i32_0 = arith.constant 0 : i32
    %c0_i32_1 = arith.constant 0 : i32
    return %c0_i32, %c0_i32_0 : i32, i32
  }
  func.func @transform_5(%arg0: i32) -> (i32, i32) {
    %c0_i32 = arith.constant 0 : i32
    %c0_i32_0 = arith.constant 0 : i32
    %c0_i32_1 = arith.constant 0 : i32
    return %c0_i32, %c0_i32_0 : i32, i32
  }
  func.func @transform_6(%arg0: i32) -> (i32, i32) {
    %c0_i32 = arith.constant 0 : i32
    %c0_i32_0 = arith.constant 0 : i32
    %c0_i32_1 = arith.constant 0 : i32
    return %c0_i32, %c0_i32_0 : i32, i32
  }
  func.func @transform_7(%arg0: i32) -> (i32, i32) {
    %c0_i32 = arith.constant 0 : i32
    %c0_i32_0 = arith.constant 0 : i32
    %c0_i32_1 = arith.constant 0 : i32
    return %c0_i32, %c0_i32_0 : i32, i32
  }
  func.func @transform_8(%arg0: i32) -> (i32, i32) {
    %c0_i32 = arith.constant 0 : i32
    %c0_i32_0 = arith.constant 0 : i32
    %c0_i32_1 = arith.constant 0 : i32
    return %c0_i32, %c0_i32_0 : i32, i32
  }
  func.func @transform_9(%arg0: i32) -> (i32, i32) {
    %c0_i32 = arith.constant 0 : i32
    %c0_i32_0 = arith.constant 0 : i32
    %c0_i32_1 = arith.constant 0 : i32
    return %c0_i32, %c0_i32_0 : i32, i32
  }
  func.func @transform_10(%arg0: i32) -> (i32, i32) {
    %c0_i32 = arith.constant 0 : i32
    %c0_i32_0 = arith.constant 0 : i32
    %c0_i32_1 = arith.constant 0 : i32
    return %c0_i32, %c0_i32_0 : i32, i32
  }
  func.func @transform_11(%arg0: i32) -> (i32, i32) {
    %c0_i32 = arith.constant 0 : i32
    %c0_i32_0 = arith.constant 0 : i32
    return %c0_i32, %arg0 : i32, i32
  }
}

</mosaic_0001>

<llo_original>
// kernel: dual_projection_net.2
$region0: #{dual_projection_net.2}
  #allocation0 [shape = 'u32[]', space=smem, size = 0x4, offset = 0x4, fixed_abs, tag = 'smem constant byte address 0x4 - core index']
  #allocation1 [shape = 'u32[144,128]{1,0:T(1,128)}', space=vmem, size = 0x12000, scoped, tag = 'internal scratch']
  %s0 = inlined_call_operand.vmem [shape: f32[32,512], index: 0, kind: input, shape index: {}]
  %s1 = inlined_call_operand.vmem [shape: bf16[32,32], index: 1, kind: input, shape index: {}]
  %s2 = inlined_call_operand.vmem [shape: f32[32,1], index: 2, kind: input, shape index: {}]
  %s3 = inlined_call_operand.vmem [shape: bf16[32,32], index: 3, kind: input, shape index: {}]
  %s4 = inlined_call_operand.vmem [shape: f32[32,1], index: 4, kind: input, shape index: {}]
  %s5 = inlined_call_operand.vmem [shape: bf16[32,32], index: 5, kind: input, shape index: {}]
  %s6 = inlined_call_operand.vmem [shape: f32[32,1], index: 6, kind: input, shape index: {}]
  %s7 = inlined_call_operand.vmem [shape: bf16[32,32], index: 7, kind: input, shape index: {}]
  %s8 = inlined_call_operand.vmem [shape: f32[32,1], index: 8, kind: input, shape index: {}]
  %s9 = inlined_call_operand.vmem [shape: bf16[32,32], index: 9, kind: input, shape index: {}]
  %s10 = inlined_call_operand.vmem [shape: f32[32,1], index: 10, kind: input, shape index: {}]
  %s11 = inlined_call_operand.vmem [shape: f32[32,512], index: 11, kind: output, shape index: {}]
  %s12 = sld [smem:[#allocation0]]
  $region54: #{dual_projection_net.2} parent=0
    _
  %s14 = ssub.s32 1, %s12
  %s15 = scalar_select 0, %s14, %s12
  // Predicated region
  $region2: #{dual_projection_net.2} parent=0 // pred_check
    _
  $region3: #{dual_projection_net.2} parent=0 // pred_check_branch
    %17 = sbr.rel (0) target = $region5
  $region4: #{dual_projection_net.2} parent=0 // pred_region
    _
  $region5: #{dual_projection_net.2} parent=0 // pred_fallthru
    _
  // Predicated region
  $region6: #{dual_projection_net.2} parent=0 // pred_check
    _
  $region7: #{dual_projection_net.2} parent=0 // pred_check_branch
    %19 = sbr.rel (0) target = $region9
  $region8: #{dual_projection_net.2} parent=0 // pred_region
    _
  $region9: #{dual_projection_net.2} parent=0 // pred_fallthru
    _
  // Predicated region
  $region10: #{dual_projection_net.2} parent=0 // pred_check
    _
  $region11: #{dual_projection_net.2} parent=0 // pred_check_branch
    %21 = sbr.rel (0) target = $region13
  $region12: #{dual_projection_net.2} parent=0 // pred_region
    _
  $region13: #{dual_projection_net.2} parent=0 // pred_fallthru
    _
  // Predicated region
  $region14: #{dual_projection_net.2} parent=0 // pred_check
    _
  $region15: #{dual_projection_net.2} parent=0 // pred_check_branch
    %23 = sbr.rel (0) target = $region17
  $region16: #{dual_projection_net.2} parent=0 // pred_region
    _
  $region17: #{dual_projection_net.2} parent=0 // pred_fallthru
    _
  // Predicated region
  $region18: #{dual_projection_net.2} parent=0 // pred_check
    _
  $region19: #{dual_projection_net.2} parent=0 // pred_check_branch
    %25 = sbr.rel (0) target = $region21
  $region20: #{dual_projection_net.2} parent=0 // pred_region
    _
  $region21: #{dual_projection_net.2} parent=0 // pred_fallthru
    _
  // Predicated region
  $region22: #{dual_projection_net.2} parent=0 // pred_check
    _
  $region23: #{dual_projection_net.2} parent=0 // pred_check_branch
    %27 = sbr.rel (0) target = $region25
  $region24: #{dual_projection_net.2} parent=0 // pred_region
    _
  $region25: #{dual_projection_net.2} parent=0 // pred_fallthru
    _
  // Predicated region
  $region26: #{dual_projection_net.2} parent=0 // pred_check
    _
  $region27: #{dual_projection_net.2} parent=0 // pred_check_branch
    %29 = sbr.rel (0) target = $region29
  $region28: #{dual_projection_net.2} parent=0 // pred_region
    _
  $region29: #{dual_projection_net.2} parent=0 // pred_fallthru
    _
  // Predicated region
  $region30: #{dual_projection_net.2} parent=0 // pred_check
    _
  $region31: #{dual_projection_net.2} parent=0 // pred_check_branch
    %31 = sbr.rel (0) target = $region33
  $region32: #{dual_projection_net.2} parent=0 // pred_region
    _
  $region33: #{dual_projection_net.2} parent=0 // pred_fallthru
    _
  // Predicated region
  $region34: #{dual_projection_net.2} parent=0 // pred_check
    _
  $region35: #{dual_projection_net.2} parent=0 // pred_check_branch
    %33 = sbr.rel (0) target = $region37
  $region36: #{dual_projection_net.2} parent=0 // pred_region
    _
  $region37: #{dual_projection_net.2} parent=0 // pred_fallthru
    _
  // Predicated region
  $region38: #{dual_projection_net.2} parent=0 // pred_check
    _
  $region39: #{dual_projection_net.2} parent=0 // pred_check_branch
    %35 = sbr.rel (0) target = $region41
  $region40: #{dual_projection_net.2} parent=0 // pred_region
    _
  $region41: #{dual_projection_net.2} parent=0 // pred_fallthru
    _
  // Predicated region
  $region42: #{dual_projection_net.2} parent=0 // pred_check
    _
  $region43: #{dual_projection_net.2} parent=0 // pred_check_branch
    %37 = sbr.rel (0) target = $region45
  $region44: #{dual_projection_net.2} parent=0 // pred_region
    _
  $region45: #{dual_projection_net.2} parent=0 // pred_fallthru
    _
  %v39 = vld [vmem:[%s1] sm:$0xf]
  %v40 = vld [vmem:[%s1 + $0x4] sm:$0xf]
  %v41 = vld [vmem:[%s1 + $0x8] sm:$0xf]
  %v42 = vld [vmem:[%s1 + $0xc] sm:$0xf]
  %v43 = vld [vmem:[%s3] sm:$0xf]
  %v44 = vld [vmem:[%s3 + $0x4] sm:$0xf]
  %v45 = vld [vmem:[%s3 + $0x8] sm:$0xf]
  %v46 = vld [vmem:[%s3 + $0xc] sm:$0xf]
  %v47 = vld [vmem:[%s5] sm:$0xf]
  %v48 = vld [vmem:[%s5 + $0x4] sm:$0xf]
  %v49 = vld [vmem:[%s5 + $0x8] sm:$0xf]
  %v50 = vld [vmem:[%s5 + $0xc] sm:$0xf]
  %v51 = vld [vmem:[%s7] sm:$0xf]
  %v52 = vld [vmem:[%s7 + $0x4] sm:$0xf]
  %v53 = vld [vmem:[%s7 + $0x8] sm:$0xf]
  %v54 = vld [vmem:[%s7 + $0xc] sm:$0xf]
  %v55 = vld [vmem:[%s9] sm:$0xf]
  %v56 = vld [vmem:[%s9 + $0x4] sm:$0xf]
  %v57 = vld [vmem:[%s9 + $0x8] sm:$0xf]
  %v58 = vld [vmem:[%s9 + $0xc] sm:$0xf]
  %v59 = vld [vmem:[%s2] sm:$0xff]
  %v60 = vld [vmem:[%s2 + $0x8] sm:$0xff]
  %v61 = vld [vmem:[%s2 + $0x10] sm:$0xff]
  %v62 = vld [vmem:[%s2 + $0x18] sm:$0xff]
  %v63 = vld [vmem:[%s4] sm:$0xff]
  %v64 = vld [vmem:[%s4 + $0x8] sm:$0xff]
  %v65 = vld [vmem:[%s4 + $0x10] sm:$0xff]
  %v66 = vld [vmem:[%s4 + $0x18] sm:$0xff]
  %v67 = vld [vmem:[%s6] sm:$0xff]
  %v68 = vld [vmem:[%s6 + $0x8] sm:$0xff]
  %v69 = vld [vmem:[%s6 + $0x10] sm:$0xff]
  %v70 = vld [vmem:[%s6 + $0x18] sm:$0xff]
  %v71 = vld [vmem:[%s8] sm:$0xff]
  %v72 = vld [vmem:[%s8 + $0x8] sm:$0xff]
  %v73 = vld [vmem:[%s8 + $0x10] sm:$0xff]
  %v74 = vld [vmem:[%s8 + $0x18] sm:$0xff]
  %v75 = vld [vmem:[%s10] sm:$0xff]
  %v76 = vld [vmem:[%s10 + $0x8] sm:$0xff]
  %v77 = vld [vmem:[%s10 + $0x10] sm:$0xff]
  %v78 = vld [vmem:[%s10 + $0x18] sm:$0xff]
  %v79 = vld [vmem:[%s0] sm:$0xff]
  %v80 = vld [vmem:[%s0 + $0x8] sm:$0xff]
  %v81 = vld [vmem:[%s0 + $0x20] sm:$0xff]
  %v82 = vld [vmem:[%s0 + $0x28] sm:$0xff]
  %v83 = vld [vmem:[%s0 + $0x40] sm:$0xff]
  %v84 = vld [vmem:[%s0 + $0x48] sm:$0xff]
  %v85 = vld [vmem:[%s0 + $0x60] sm:$0xff]
  %v86 = vld [vmem:[%s0 + $0x68] sm:$0xff]
  %v87 = vpack.c.bf16 %v81, %v79
  %v88 = vpack.c.bf16 %v82, %v80
  %v89 = vpack.c.bf16 %v85, %v83
  %v90 = vpack.c.bf16 %v86, %v84
  %92 = vset.pattern.permute.xlu0 0
  %93 = vperm.xlu0 %92, %v59
  %v94 = vpop.permute.xlu0 %93
  %97 = vset.pattern.permute.xlu0 0
  %98 = vperm.xlu0 %97, %v60
  %v99 = vpop.permute.xlu0 %98
  %102 = vset.pattern.permute.xlu0 0
  %103 = vperm.xlu0 %102, %v61
  %v104 = vpop.permute.xlu0 %103
  %107 = vset.pattern.permute.xlu0 0
  %108 = vperm.xlu0 %107, %v62
  %v109 = vpop.permute.xlu0 %108
  %v115 = vunpack.c.l.b16 %v39
  %v116 = vunpack.c.l.b16 %v40
  %v117 = vunpack.c.l.b16 %v41
  %v118 = vunpack.c.l.b16 %v42
  %v119 = vpack.c.b16 %v116, %v115
  %v120 = vpack.c.b16 %v118, %v117
  %vm121 = vcmask 261120
  %v123 = vsel %vm121, %v119, 0
  %v126 = vsel %vm121, %v120, 0
  %128 = vmatprep.subr.bf16.mxu0 0
  %129 = vmatpush1.bf16.msra.mxu0 0
  %130 = vmatprep.subr.bf16.mxu0 0
  %131 = vmatpush1.bf16.msra.mxu0 0
  %132 = vmatprep.subr.bf16.mxu0 0
  %133 = vmatpush1.bf16.msra.mxu0 0
  %134 = vmatprep.subr.bf16.mxu0 0
  %135 = vmatpush1.bf16.msra.mxu0 0
  %136 = vmatprep.subr.bf16.mxu0 0
  %137 = vmatpush1.bf16.msra.mxu0 0
  %138 = vmatprep.subr.bf16.mxu0 0
  %139 = vmatpush1.bf16.msra.mxu0 0
  %140 = vmatprep.subr.bf16.mxu0 %v90
  %141 = vmatpush1.bf16.msra.mxu0 %v89
  %142 = vmatprep.subr.bf16.mxu0 %v88
  %143 = vmatpush1.bf16.msra.mxu0 %v87
  %144 = vmatprep.subr.bf16.mxu0 0
  %145 = vmatpush2.bf16.msra.mxu0 0
  %146 = vmatprep.subr.bf16.mxu0 0
  %147 = vmatpush2.bf16.msra.mxu0 0
  %148 = vmatprep.subr.bf16.mxu0 0
  %149 = vmatpush2.bf16.msra.mxu0 0
  %150 = vmatprep.subr.bf16.mxu0 0
  %151 = vmatpush2.bf16.msra.mxu0 0
  %152 = vmatprep.subr.bf16.mxu0 0
  %153 = vmatpush2.bf16.msra.mxu0 0
  %154 = vmatprep.subr.bf16.mxu0 0
  %155 = vmatpush2.bf16.msra.mxu0 0
  %156 = vmatprep.subr.bf16.mxu0 0
  %157 = vmatpush2.bf16.msra.mxu0 0
  %158 = vmatprep.subr.bf16.mxu0 0
  %159 = vmatpush2.bf16.msra.mxu0 0
  %160 = vmatprep.mubr.bf16.mxu0 0
  %161 = vmatmul.mubr.bf16.gmra.mxu0 %v123
  %v162 = vpop.f32.mrf.mxu0
  %v163 = vadd.f32 %v94, %v162
  %v164 = vpop.f32.mrf.mxu0
  %v165 = vadd.f32 %v94, %v164
  %v166 = vpop.f32.mrf.mxu0
  %v167 = vadd.f32 %v99, %v166
  %v168 = vpop.f32.mrf.mxu0
  %v169 = vadd.f32 %v99, %v168
  %170 = vmatprep.mubr.bf16.mxu0 0
  %171 = vmatmul.mubr.bf16.gmra.mxu0 %v126
  %v172 = vpop.f32.mrf.mxu0
  %v173 = vadd.f32 %v104, %v172
  %v174 = vpop.f32.mrf.mxu0
  %v175 = vadd.f32 %v104, %v174
  %v176 = vpop.f32.mrf.mxu0
  %v177 = vadd.f32 %v109, %v176
  %v178 = vpop.f32.mrf.mxu0
  %v179 = vadd.f32 %v109, %v178
  %180 = vdwg.mxu0
  %v181 = vmax.f32 %v163, 0.0
  %v182 = vmax.f32 %v165, 0.0
  %v183 = vmax.f32 %v167, 0.0
  %v184 = vmax.f32 %v169, 0.0
  %v185 = vmax.f32 %v173, 0.0
  %v186 = vmax.f32 %v175, 0.0
  %v187 = vmax.f32 %v177, 0.0
  %v188 = vmax.f32 %v179, 0.0
  %v189 = vpack.c.bf16 %v183, %v181
  %v190 = vpack.c.bf16 %v184, %v182
  %v191 = vpack.c.bf16 %v187, %v185
  %v192 = vpack.c.bf16 %v188, %v186
  %194 = vset.pattern.permute.xlu0 0
  %195 = vperm.xlu0 %194, %v63
  %v196 = vpop.permute.xlu0 %195
  %199 = vset.pattern.permute.xlu0 0
  %200 = vperm.xlu0 %199, %v64
  %v201 = vpop.permute.xlu0 %200
  %204 = vset.pattern.permute.xlu0 0
  %205 = vperm.xlu0 %204, %v65
  %v206 = vpop.permute.xlu0 %205
  %209 = vset.pattern.permute.xlu0 0
  %210 = vperm.xlu0 %209, %v66
  %v211 = vpop.permute.xlu0 %210
  %v217 = vunpack.c.l.b16 %v43
  %v218 = vunpack.c.l.b16 %v44
  %v219 = vunpack.c.l.b16 %v45
  %v220 = vunpack.c.l.b16 %v46
  %v221 = vpack.c.b16 %v218, %v217
  %v222 = vpack.c.b16 %v220, %v219
  %v224 = vsel %vm121, %v221, 0
  %v227 = vsel %vm121, %v222, 0
  %229 = vmatprep.subr.bf16.mxu0 0
  %230 = vmatpush1.bf16.msra.mxu0 0
  %231 = vmatprep.subr.bf16.mxu0 0
  %232 = vmatpush1.bf16.msra.mxu0 0
  %233 = vmatprep.subr.bf16.mxu0 0
  %234 = vmatpush1.bf16.msra.mxu0 0
  %235 = vmatprep.subr.bf16.mxu0 0
  %236 = vmatpush1.bf16.msra.mxu0 0
  %237 = vmatprep.subr.bf16.mxu0 0
  %238 = vmatpush1.bf16.msra.mxu0 0
  %239 = vmatprep.subr.bf16.mxu0 0
  %240 = vmatpush1.bf16.msra.mxu0 0
  %241 = vmatprep.subr.bf16.mxu0 %v192
  %242 = vmatpush1.bf16.msra.mxu0 %v191
  %243 = vmatprep.subr.bf16.mxu0 %v190
  %244 = vmatpush1.bf16.msra.mxu0 %v189
  %245 = vmatprep.subr.bf16.mxu0 0
  %246 = vmatpush2.bf16.msra.mxu0 0
  %247 = vmatprep.subr.bf16.mxu0 0
  %248 = vmatpush2.bf16.msra.mxu0 0
  %249 = vmatprep.subr.bf16.mxu0 0
  %250 = vmatpush2.bf16.msra.mxu0 0
  %251 = vmatprep.subr.bf16.mxu0 0
  %252 = vmatpush2.bf16.msra.mxu0 0
  %253 = vmatprep.subr.bf16.mxu0 0
  %254 = vmatpush2.bf16.msra.mxu0 0
  %255 = vmatprep.subr.bf16.mxu0 0
  %256 = vmatpush2.bf16.msra.mxu0 0
  %257 = vmatprep.subr.bf16.mxu0 0
  %258 = vmatpush2.bf16.msra.mxu0 0
  %259 = vmatprep.subr.bf16.mxu0 0
  %260 = vmatpush2.bf16.msra.mxu0 0
  %261 = vmatprep.mubr.bf16.mxu0 0
  %262 = vmatmul.mubr.bf16.gmra.mxu0 %v224
  %v263 = vpop.f32.mrf.mxu0
  %v264 = vadd.f32 %v196, %v263
  %v265 = vpop.f32.mrf.mxu0
  %v266 = vadd.f32 %v196, %v265
  %v267 = vpop.f32.mrf.mxu0
  %v268 = vadd.f32 %v201, %v267
  %v269 = vpop.f32.mrf.mxu0
  %v270 = vadd.f32 %v201, %v269
  %271 = vmatprep.mubr.bf16.mxu0 0
  %272 = vmatmul.mubr.bf16.gmra.mxu0 %v227
  %v273 = vpop.f32.mrf.mxu0
  %v274 = vadd.f32 %v206, %v273
  %v275 = vpop.f32.mrf.mxu0
  %v276 = vadd.f32 %v206, %v275
  %v277 = vpop.f32.mrf.mxu0
  %v278 = vadd.f32 %v211, %v277
  %v279 = vpop.f32.mrf.mxu0
  %v280 = vadd.f32 %v211, %v279
  %281 = vdwg.mxu0
  %v282 = vmax.f32 %v264, 0.0
  %v283 = vmax.f32 %v266, 0.0
  %v284 = vmax.f32 %v268, 0.0
  %v285 = vmax.f32 %v270, 0.0
  %v286 = vmax.f32 %v274, 0.0
  %v287 = vmax.f32 %v276, 0.0
  %v288 = vmax.f32 %v278, 0.0
  %v289 = vmax.f32 %v280, 0.0
  %v290 = vpack.c.bf16 %v284, %v282
  %v291 = vpack.c.bf16 %v285, %v283
  %v292 = vpack.c.bf16 %v288, %v286
  %v293 = vpack.c.bf16 %v289, %v287
  %295 = vset.pattern.permute.xlu0 0
  %296 = vperm.xlu0 %295, %v67
  %v297 = vpop.permute.xlu0 %296
  %300 = vset.pattern.permute.xlu0 0
  %301 = vperm.xlu0 %300, %v68
  %v302 = vpop.permute.xlu0 %301
  %305 = vset.pattern.permute.xlu0 0
  %306 = vperm.xlu0 %305, %v69
  %v307 = vpop.permute.xlu0 %306
  %310 = vset.pattern.permute.xlu0 0
  %311 = vperm.xlu0 %310, %v70
  %v312 = vpop.permute.xlu0 %311
  %v318 = vunpack.c.l.b16 %v47
  %v319 = vunpack.c.l.b16 %v48
  %v320 = vunpack.c.l.b16 %v49
  %v321 = vunpack.c.l.b16 %v50
  %v322 = vpack.c.b16 %v319, %v318
  %v323 = vpack.c.b16 %v321, %v320
  %v325 = vsel %vm121, %v322, 0
  %v328 = vsel %vm121, %v323, 0
  %330 = vmatprep.subr.bf16.mxu0 0
  %331 = vmatpush1.bf16.msra.mxu0 0
  %332 = vmatprep.subr.bf16.mxu0 0
  %333 = vmatpush1.bf16.msra.mxu0 0
  %334 = vmatprep.subr.bf16.mxu0 0
  %335 = vmatpush1.bf16.msra.mxu0 0
  %336 = vmatprep.subr.bf16.mxu0 0
  %337 = vmatpush1.bf16.msra.mxu0 0
  %338 = vmatprep.subr.bf16.mxu0 0
  %339 = vmatpush1.bf16.msra.mxu0 0
  %340 = vmatprep.subr.bf16.mxu0 0
  %341 = vmatpush1.bf16.msra.mxu0 0
  %342 = vmatprep.subr.bf16.mxu0 %v293
  %343 = vmatpush1.bf16.msra.mxu0 %v292
  %344 = vmatprep.subr.bf16.mxu0 %v291
  %345 = vmatpush1.bf16.msra.mxu0 %v290
  %346 = vmatprep.subr.bf16.mxu0 0
  %347 = vmatpush2.bf16.msra.mxu0 0
  %348 = vmatprep.subr.bf16.mxu0 0
  %349 = vmatpush2.bf16.msra.mxu0 0
  %350 = vmatprep.subr.bf16.mxu0 0
  %351 = vmatpush2.bf16.msra.mxu0 0
  %352 = vmatprep.subr.bf16.mxu0 0
  %353 = vmatpush2.bf16.msra.mxu0 0
  %354 = vmatprep.subr.bf16.mxu0 0
  %355 = vmatpush2.bf16.msra.mxu0 0
  %356 = vmatprep.subr.bf16.mxu0 0
  %357 = vmatpush2.bf16.msra.mxu0 0
  %358 = vmatprep.subr.bf16.mxu0 0
  %359 = vmatpush2.bf16.msra.mxu0 0
  %360 = vmatprep.subr.bf16.mxu0 0
  %361 = vmatpush2.bf16.msra.mxu0 0
  %362 = vmatprep.mubr.bf16.mxu0 0
  %363 = vmatmul.mubr.bf16.gmra.mxu0 %v325
  %v364 = vpop.f32.mrf.mxu0
  %v365 = vadd.f32 %v297, %v364
  %v366 = vpop.f32.mrf.mxu0
  %v367 = vadd.f32 %v297, %v366
  %v368 = vpop.f32.mrf.mxu0
  %v369 = vadd.f32 %v302, %v368
  %v370 = vpop.f32.mrf.mxu0
  %v371 = vadd.f32 %v302, %v370
  %372 = vmatprep.mubr.bf16.mxu0 0
  %373 = vmatmul.mubr.bf16.gmra.mxu0 %v328
  %v374 = vpop.f32.mrf.mxu0
  %v375 = vadd.f32 %v307, %v374
  %v376 = vpop.f32.mrf.mxu0
  %v377 = vadd.f32 %v307, %v376
  %v378 = vpop.f32.mrf.mxu0
  %v379 = vadd.f32 %v312, %v378
  %v380 = vpop.f32.mrf.mxu0
  %v381 = vadd.f32 %v312, %v380
  %382 = vdwg.mxu0
  %v383 = vmax.f32 %v365, 0.0
  %v384 = vmax.f32 %v367, 0.0
  %v385 = vmax.f32 %v369, 0.0
  %v386 = vmax.f32 %v371, 0.0
  %v387 = vmax.f32 %v375, 0.0
  %v388 = vmax.f32 %v377, 0.0
  %v389 = vmax.f32 %v379, 0.0
  %v390 = vmax.f32 %v381, 0.0
  %v391 = vpack.c.bf16 %v385, %v383
  %v392 = vpack.c.bf16 %v386, %v384
  %v393 = vpack.c.bf16 %v389, %v387
  %v394 = vpack.c.bf16 %v390, %v388
  %396 = vset.pattern.permute.xlu0 0
  %397 = vperm.xlu0 %396, %v71
  %v398 = vpop.permute.xlu0 %397
  %401 = vset.pattern.permute.xlu0 0
  %402 = vperm.xlu0 %401, %v72
  %v403 = vpop.permute.xlu0 %402
  %406 = vset.pattern.permute.xlu0 0
  %407 = vperm.xlu0 %406, %v73
  %v408 = vpop.permute.xlu0 %407
  %411 = vset.pattern.permute.xlu0 0
  %412 = vperm.xlu0 %411, %v74
  %v413 = vpop.permute.xlu0 %412
  %v419 = vunpack.c.l.b16 %v51
  %v420 = vunpack.c.l.b16 %v52
  %v421 = vunpack.c.l.b16 %v53
  %v422 = vunpack.c.l.b16 %v54
  %v423 = vpack.c.b16 %v420, %v419
  %v424 = vpack.c.b16 %v422, %v421
  %v426 = vsel %vm121, %v423, 0
  %v429 = vsel %vm121, %v424, 0
  %431 = vmatprep.subr.bf16.mxu0 0
  %432 = vmatpush1.bf16.msra.mxu0 0
  %433 = vmatprep.subr.bf16.mxu0 0
  %434 = vmatpush1.bf16.msra.mxu0 0
  %435 = vmatprep.subr.bf16.mxu0 0
  %436 = vmatpush1.bf16.msra.mxu0 0
  %437 = vmatprep.subr.bf16.mxu0 0
  %438 = vmatpush1.bf16.msra.mxu0 0
  %439 = vmatprep.subr.bf16.mxu0 0
  %440 = vmatpush1.bf16.msra.mxu0 0
  %441 = vmatprep.subr.bf16.mxu0 0
  %442 = vmatpush1.bf16.msra.mxu0 0
  %443 = vmatprep.subr.bf16.mxu0 %v394
  %444 = vmatpush1.bf16.msra.mxu0 %v393
  %445 = vmatprep.subr.bf16.mxu0 %v392
  %446 = vmatpush1.bf16.msra.mxu0 %v391
  %447 = vmatprep.subr.bf16.mxu0 0
  %448 = vmatpush2.bf16.msra.mxu0 0
  %449 = vmatprep.subr.bf16.mxu0 0
  %450 = vmatpush2.bf16.msra.mxu0 0
  %451 = vmatprep.subr.bf16.mxu0 0
  %452 = vmatpush2.bf16.msra.mxu0 0
  %453 = vmatprep.subr.bf16.mxu0 0
  %454 = vmatpush2.bf16.msra.mxu0 0
  %455 = vmatprep.subr.bf16.mxu0 0
  %456 = vmatpush2.bf16.msra.mxu0 0
  %457 = vmatprep.subr.bf16.mxu0 0
  %458 = vmatpush2.bf16.msra.mxu0 0
  %459 = vmatprep.subr.bf16.mxu0 0
  %460 = vmatpush2.bf16.msra.mxu0 0
  %461 = vmatprep.subr.bf16.mxu0 0
  %462 = vmatpush2.bf16.msra.mxu0 0
  %463 = vmatprep.mubr.bf16.mxu0 0
  %464 = vmatmul.mubr.bf16.gmra.mxu0 %v426
  %v465 = vpop.f32.mrf.mxu0
  %v466 = vadd.f32 %v398, %v465
  %v467 = vpop.f32.mrf.mxu0
  %v468 = vadd.f32 %v398, %v467
  %v469 = vpop.f32.mrf.mxu0
  %v470 = vadd.f32 %v403, %v469
  %v471 = vpop.f32.mrf.mxu0
  %v472 = vadd.f32 %v403, %v471
  %473 = vmatprep.mubr.bf16.mxu0 0
  %474 = vmatmul.mubr.bf16.gmra.mxu0 %v429
  %v475 = vpop.f32.mrf.mxu0
  %v476 = vadd.f32 %v408, %v475
  %v477 = vpop.f32.mrf.mxu0
  %v478 = vadd.f32 %v408, %v477
  %v479 = vpop.f32.mrf.mxu0
  %v480 = vadd.f32 %v413, %v479
  %v481 = vpop.f32.mrf.mxu0
  %v482 = vadd.f32 %v413, %v481
  %483 = vdwg.mxu0
  %v484 = vmax.f32 %v466, 0.0
  %v485 = vmax.f32 %v468, 0.0
  %v486 = vmax.f32 %v470, 0.0
  %v487 = vmax.f32 %v472, 0.0
  %v488 = vmax.f32 %v476, 0.0
  %v489 = vmax.f32 %v478, 0.0
  %v490 = vmax.f32 %v480, 0.0
  %v491 = vmax.f32 %v482, 0.0
  %v492 = vpack.c.bf16 %v486, %v484
  %v493 = vpack.c.bf16 %v487, %v485
  %v494 = vpack.c.bf16 %v490, %v488
  %v495 = vpack.c.bf16 %v491, %v489
  %497 = vset.pattern.permute.xlu0 0
  %498 = vperm.xlu0 %497, %v75
  %v499 = vpop.permute.xlu0 %498
  %502 = vset.pattern.permute.xlu0 0
  %503 = vperm.xlu0 %502, %v76
  %v504 = vpop.permute.xlu0 %503
  %507 = vset.pattern.permute.xlu0 0
  %508 = vperm.xlu0 %507, %v77
  %v509 = vpop.permute.xlu0 %508
  %512 = vset.pattern.permute.xlu0 0
  %513 = vperm.xlu0 %512, %v78
  %v514 = vpop.permute.xlu0 %513
  %v520 = vunpack.c.l.b16 %v55
  %v521 = vunpack.c.l.b16 %v56
  %v522 = vunpack.c.l.b16 %v57
  %v523 = vunpack.c.l.b16 %v58
  %v524 = vpack.c.b16 %v521, %v520
  %v525 = vpack.c.b16 %v523, %v522
  %v527 = vsel %vm121, %v524, 0
  %v530 = vsel %vm121, %v525, 0
  %532 = vmatprep.subr.bf16.mxu0 0
  %533 = vmatpush1.bf16.msra.mxu0 0
  %534 = vmatprep.subr.bf16.mxu0 0
  %535 = vmatpush1.bf16.msra.mxu0 0
  %536 = vmatprep.subr.bf16.mxu0 0
  %537 = vmatpush1.bf16.msra.mxu0 0
  %538 = vmatprep.subr.bf16.mxu0 0
  %539 = vmatpush1.bf16.msra.mxu0 0
  %540 = vmatprep.subr.bf16.mxu0 0
  %541 = vmatpush1.bf16.msra.mxu0 0
  %542 = vmatprep.subr.bf16.mxu0 0
  %543 = vmatpush1.bf16.msra.mxu0 0
  %544 = vmatprep.subr.bf16.mxu0 %v495
  %545 = vmatpush1.bf16.msra.mxu0 %v494
  %546 = vmatprep.subr.bf16.mxu0 %v493
  %547 = vmatpush1.bf16.msra.mxu0 %v492
  %548 = vmatprep.subr.bf16.mxu0 0
  %549 = vmatpush2.bf16.msra.mxu0 0
  %550 = vmatprep.subr.bf16.mxu0 0
  %551 = vmatpush2.bf16.msra.mxu0 0
  %552 = vmatprep.subr.bf16.mxu0 0
  %553 = vmatpush2.bf16.msra.mxu0 0
  %554 = vmatprep.subr.bf16.mxu0 0
  %555 = vmatpush2.bf16.msra.mxu0 0
  %556 = vmatprep.subr.bf16.mxu0 0
  %557 = vmatpush2.bf16.msra.mxu0 0
  %558 = vmatprep.subr.bf16.mxu0 0
  %559 = vmatpush2.bf16.msra.mxu0 0
  %560 = vmatprep.subr.bf16.mxu0 0
  %561 = vmatpush2.bf16.msra.mxu0 0
  %562 = vmatprep.subr.bf16.mxu0 0
  %563 = vmatpush2.bf16.msra.mxu0 0
  %564 = vmatprep.mubr.bf16.mxu0 0
  %565 = vmatmul.mubr.bf16.gmra.mxu0 %v527
  %v566 = vpop.f32.mrf.mxu0
  %v567 = vadd.f32 %v499, %v566
  %v568 = vpop.f32.mrf.mxu0
  %v569 = vadd.f32 %v499, %v568
  %v570 = vpop.f32.mrf.mxu0
  %v571 = vadd.f32 %v504, %v570
  %v572 = vpop.f32.mrf.mxu0
  %v573 = vadd.f32 %v504, %v572
  %574 = vmatprep.mubr.bf16.mxu0 0
  %575 = vmatmul.mubr.bf16.gmra.mxu0 %v530
  %v576 = vpop.f32.mrf.mxu0
  %v577 = vadd.f32 %v509, %v576
  %v578 = vpop.f32.mrf.mxu0
  %v579 = vadd.f32 %v509, %v578
  %v580 = vpop.f32.mrf.mxu0
  %v581 = vadd.f32 %v514, %v580
  %v582 = vpop.f32.mrf.mxu0
  %v583 = vadd.f32 %v514, %v582
  %584 = vdwg.mxu0
  %585 = vst [vmem:[%s11] sm:$0xff] %v567
  %586 = vst [vmem:[%s11 + $0x8] sm:$0xff] %v569
  %587 = vst [vmem:[%s11 + $0x20] sm:$0xff] %v571
  %588 = vst [vmem:[%s11 + $0x28] sm:$0xff] %v573
  %589 = vst [vmem:[%s11 + $0x40] sm:$0xff] %v577
  %590 = vst [vmem:[%s11 + $0x48] sm:$0xff] %v579
  %591 = vst [vmem:[%s11 + $0x60] sm:$0xff] %v581
  %592 = vst [vmem:[%s11 + $0x68] sm:$0xff] %v583
  %s593 = scalar_lea.vmem %s0, 16
  %v594 = vld [vmem:[%s593] sm:$0xff]
  %v595 = vld [vmem:[%s593 + $0x8] sm:$0xff]
  %v596 = vld [vmem:[%s593 + $0x20] sm:$0xff]
  %v597 = vld [vmem:[%s593 + $0x28] sm:$0xff]
  %v598 = vld [vmem:[%s593 + $0x40] sm:$0xff]
  %v599 = vld [vmem:[%s593 + $0x48] sm:$0xff]
  %v600 = vld [vmem:[%s593 + $0x60] sm:$0xff]
  %v601 = vld [vmem:[%s593 + $0x68] sm:$0xff]
  %v602 = vpack.c.bf16 %v596, %v594
  %v603 = vpack.c.bf16 %v597, %v595
  %v604 = vpack.c.bf16 %v600, %v598
  %v605 = vpack.c.bf16 %v601, %v599
  %606 = vmatprep.subr.bf16.mxu0 0
  %607 = vmatpush1.bf16.msra.mxu0 0
  %608 = vmatprep.subr.bf16.mxu0 0
  %609 = vmatpush1.bf16.msra.mxu0 0
  %610 = vmatprep.subr.bf16.mxu0 0
  %611 = vmatpush1.bf16.msra.mxu0 0
  %612 = vmatprep.subr.bf16.mxu0 0
  %613 = vmatpush1.bf16.msra.mxu0 0
  %614 = vmatprep.subr.bf16.mxu0 0
  %615 = vmatpush1.bf16.msra.mxu0 0
  %616 = vmatprep.subr.bf16.mxu0 0
  %617 = vmatpush1.bf16.msra.mxu0 0
  %618 = vmatprep.subr.bf16.mxu0 %v605
  %619 = vmatpush1.bf16.msra.mxu0 %v604
  %620 = vmatprep.subr.bf16.mxu0 %v603
  %621 = vmatpush1.bf16.msra.mxu0 %v602
  %622 = vmatprep.subr.bf16.mxu0 0
  %623 = vmatpush2.bf16.msra.mxu0 0
  %624 = vmatprep.subr.bf16.mxu0 0
  %625 = vmatpush2.bf16.msra.mxu0 0
  %626 = vmatprep.subr.bf16.mxu0 0
  %627 = vmatpush2.bf16.msra.mxu0 0
  %628 = vmatprep.subr.bf16.mxu0 0
  %629 = vmatpush2.bf16.msra.mxu0 0
  %630 = vmatprep.subr.bf16.mxu0 0
  %631 = vmatpush2.bf16.msra.mxu0 0
  %632 = vmatprep.subr.bf16.mxu0 0
  %633 = vmatpush2.bf16.msra.mxu0 0
  %634 = vmatprep.subr.bf16.mxu0 0
  %635 = vmatpush2.bf16.msra.mxu0 0
  %636 = vmatprep.subr.bf16.mxu0 0
  %637 = vmatpush2.bf16.msra.mxu0 0
  %638 = vmatprep.mubr.bf16.mxu0 0
  %639 = vmatmul.mubr.bf16.gmra.mxu0 %v123
  %v640 = vpop.f32.mrf.mxu0
  %v641 = vadd.f32 %v94, %v640
  %v642 = vpop.f32.mrf.mxu0
  %v643 = vadd.f32 %v94, %v642
  %v644 = vpop.f32.mrf.mxu0
  %v645 = vadd.f32 %v99, %v644
  %v646 = vpop.f32.mrf.mxu0
  %v647 = vadd.f32 %v99, %v646
  %648 = vmatprep.mubr.bf16.mxu0 0
  %649 = vmatmul.mubr.bf16.gmra.mxu0 %v126
  %v650 = vpop.f32.mrf.mxu0
  %v651 = vadd.f32 %v104, %v650
  %v652 = vpop.f32.mrf.mxu0
  %v653 = vadd.f32 %v104, %v652
  %v654 = vpop.f32.mrf.mxu0
  %v655 = vadd.f32 %v109, %v654
  %v656 = vpop.f32.mrf.mxu0
  %v657 = vadd.f32 %v109, %v656
  %658 = vdwg.mxu0
  %v659 = vmax.f32 %v641, 0.0
  %v660 = vmax.f32 %v643, 0.0
  %v661 = vmax.f32 %v645, 0.0
  %v662 = vmax.f32 %v647, 0.0
  %v663 = vmax.f32 %v651, 0.0
  %v664 = vmax.f32 %v653, 0.0
  %v665 = vmax.f32 %v655, 0.0
  %v666 = vmax.f32 %v657, 0.0
  %v667 = vpack.c.bf16 %v661, %v659
  %v668 = vpack.c.bf16 %v662, %v660
  %v669 = vpack.c.bf16 %v665, %v663
  %v670 = vpack.c.bf16 %v666, %v664
  %671 = vmatprep.subr.bf16.mxu0 0
  %672 = vmatpush1.bf16.msra.mxu0 0
  %673 = vmatprep.subr.bf16.mxu0 0
  %674 = vmatpush1.bf16.msra.mxu0 0
  %675 = vmatprep.subr.bf16.mxu0 0
  %676 = vmatpush1.bf16.msra.mxu0 0
  %677 = vmatprep.subr.bf16.mxu0 0
  %678 = vmatpush1.bf16.msra.mxu0 0
  %679 = vmatprep.subr.bf16.mxu0 0
  %680 = vmatpush1.bf16.msra.mxu0 0
  %681 = vmatprep.subr.bf16.mxu0 0
  %682 = vmatpush1.bf16.msra.mxu0 0
  %683 = vmatprep.subr.bf16.mxu0 %v670
  %684 = vmatpush1.bf16.msra.mxu0 %v669
  %685 = vmatprep.subr.bf16.mxu0 %v668
  %686 = vmatpush1.bf16.msra.mxu0 %v667
  %687 = vmatprep.subr.bf16.mxu0 0
  %688 = vmatpush2.bf16.msra.mxu0 0
  %689 = vmatprep.subr.bf16.mxu0 0
  %690 = vmatpush2.bf16.msra.mxu0 0
  %691 = vmatprep.subr.bf16.mxu0 0
  %692 = vmatpush2.bf16.msra.mxu0 0
  %693 = vmatprep.subr.bf16.mxu0 0
  %694 = vmatpush2.bf16.msra.mxu0 0
  %695 = vmatprep.subr.bf16.mxu0 0
  %696 = vmatpush2.bf16.msra.mxu0 0
  %697 = vmatprep.subr.bf16.mxu0 0
  %698 = vmatpush2.bf16.msra.mxu0 0
  %699 = vmatprep.subr.bf16.mxu0 0
  %700 = vmatpush2.bf16.msra.mxu0 0
  %701 = vmatprep.subr.bf16.mxu0 0
  %702 = vmatpush2.bf16.msra.mxu0 0
  %703 = vmatprep.mubr.bf16.mxu0 0
  %704 = vmatmul.mubr.bf16.gmra.mxu0 %v224
  %v705 = vpop.f32.mrf.mxu0
  %v706 = vadd.f32 %v196, %v705
  %v707 = vpop.f32.mrf.mxu0
  %v708 = vadd.f32 %v196, %v707
  %v709 = vpop.f32.mrf.mxu0
  %v710 = vadd.f32 %v201, %v709
  %v711 = vpop.f32.mrf.mxu0
  %v712 = vadd.f32 %v201, %v711
  %713 = vmatprep.mubr.bf16.mxu0 0
  %714 = vmatmul.mubr.bf16.gmra.mxu0 %v227
  %v715 = vpop.f32.mrf.mxu0
  %v716 = vadd.f32 %v206, %v715
  %v717 = vpop.f32.mrf.mxu0
  %v718 = vadd.f32 %v206, %v717
  %v719 = vpop.f32.mrf.mxu0
  %v720 = vadd.f32 %v211, %v719
  %v721 = vpop.f32.mrf.mxu0
  %v722 = vadd.f32 %v211, %v721
  %723 = vdwg.mxu0
  %v724 = vmax.f32 %v706, 0.0
  %v725 = vmax.f32 %v708, 0.0
  %v726 = vmax.f32 %v710, 0.0
  %v727 = vmax.f32 %v712, 0.0
  %v728 = vmax.f32 %v716, 0.0
  %v729 = vmax.f32 %v718, 0.0
  %v730 = vmax.f32 %v720, 0.0
  %v731 = vmax.f32 %v722, 0.0
  %v732 = vpack.c.bf16 %v726, %v724
  %v733 = vpack.c.bf16 %v727, %v725
  %v734 = vpack.c.bf16 %v730, %v728
  %v735 = vpack.c.bf16 %v731, %v729
  %736 = vmatprep.subr.bf16.mxu0 0
  %737 = vmatpush1.bf16.msra.mxu0 0
  %738 = vmatprep.subr.bf16.mxu0 0
  %739 = vmatpush1.bf16.msra.mxu0 0
  %740 = vmatprep.subr.bf16.mxu0 0
  %741 = vmatpush1.bf16.msra.mxu0 0
  %742 = vmatprep.subr.bf16.mxu0 0
  %743 = vmatpush1.bf16.msra.mxu0 0
  %744 = vmatprep.subr.bf16.mxu0 0
  %745 = vmatpush1.bf16.msra.mxu0 0
  %746 = vmatprep.subr.bf16.mxu0 0
  %747 = vmatpush1.bf16.msra.mxu0 0
  %748 = vmatprep.subr.bf16.mxu0 %v735
  %749 = vmatpush1.bf16.msra.mxu0 %v734
  %750 = vmatprep.subr.bf16.mxu0 %v733
  %751 = vmatpush1.bf16.msra.mxu0 %v732
  %752 = vmatprep.subr.bf16.mxu0 0
  %753 = vmatpush2.bf16.msra.mxu0 0
  %754 = vmatprep.subr.bf16.mxu0 0
  %755 = vmatpush2.bf16.msra.mxu0 0
  %756 = vmatprep.subr.bf16.mxu0 0
  %757 = vmatpush2.bf16.msra.mxu0 0
  %758 = vmatprep.subr.bf16.mxu0 0
  %759 = vmatpush2.bf16.msra.mxu0 0
  %760 = vmatprep.subr.bf16.mxu0 0
  %761 = vmatpush2.bf16.msra.mxu0 0
  %762 = vmatprep.subr.bf16.mxu0 0
  %763 = vmatpush2.bf16.msra.mxu0 0
  %764 = vmatprep.subr.bf16.mxu0 0
  %765 = vmatpush2.bf16.msra.mxu0 0
  %766 = vmatprep.subr.bf16.mxu0 0
  %767 = vmatpush2.bf16.msra.mxu0 0
  %768 = vmatprep.mubr.bf16.mxu0 0
  %769 = vmatmul.mubr.bf16.gmra.mxu0 %v325
  %v770 = vpop.f32.mrf.mxu0
  %v771 = vadd.f32 %v297, %v770
  %v772 = vpop.f32.mrf.mxu0
  %v773 = vadd.f32 %v297, %v772
  %v774 = vpop.f32.mrf.mxu0
  %v775 = vadd.f32 %v302, %v774
  %v776 = vpop.f32.mrf.mxu0
  %v777 = vadd.f32 %v302, %v776
  %778 = vmatprep.mubr.bf16.mxu0 0
  %779 = vmatmul.mubr.bf16.gmra.mxu0 %v328
  %v780 = vpop.f32.mrf.mxu0
  %v781 = vadd.f32 %v307, %v780
  %v782 = vpop.f32.mrf.mxu0
  %v783 = vadd.f32 %v307, %v782
  %v784 = vpop.f32.mrf.mxu0
  %v785 = vadd.f32 %v312, %v784
  %v786 = vpop.f32.mrf.mxu0
  %v787 = vadd.f32 %v312, %v786
  %788 = vdwg.mxu0
  %v789 = vmax.f32 %v771, 0.0
  %v790 = vmax.f32 %v773, 0.0
  %v791 = vmax.f32 %v775, 0.0
  %v792 = vmax.f32 %v777, 0.0
  %v793 = vmax.f32 %v781, 0.0
  %v794 = vmax.f32 %v783, 0.0
  %v795 = vmax.f32 %v785, 0.0
  %v796 = vmax.f32 %v787, 0.0
  %v797 = vpack.c.bf16 %v791, %v789
  %v798 = vpack.c.bf16 %v792, %v790
  %v799 = vpack.c.bf16 %v795, %v793
  %v800 = vpack.c.bf16 %v796, %v794
  %801 = vmatprep.subr.bf16.mxu0 0
  %802 = vmatpush1.bf16.msra.mxu0 0
  %803 = vmatprep.subr.bf16.mxu0 0
  %804 = vmatpush1.bf16.msra.mxu0 0
  %805 = vmatprep.subr.bf16.mxu0 0
  %806 = vmatpush1.bf16.msra.mxu0 0
  %807 = vmatprep.subr.bf16.mxu0 0
  %808 = vmatpush1.bf16.msra.mxu0 0
  %809 = vmatprep.subr.bf16.mxu0 0
  %810 = vmatpush1.bf16.msra.mxu0 0
  %811 = vmatprep.subr.bf16.mxu0 0
  %812 = vmatpush1.bf16.msra.mxu0 0
  %813 = vmatprep.subr.bf16.mxu0 %v800
  %814 = vmatpush1.bf16.msra.mxu0 %v799
  %815 = vmatprep.subr.bf16.mxu0 %v798
  %816 = vmatpush1.bf16.msra.mxu0 %v797
  %817 = vmatprep.subr.bf16.mxu0 0
  %818 = vmatpush2.bf16.msra.mxu0 0
  %819 = vmatprep.subr.bf16.mxu0 0
  %820 = vmatpush2.bf16.msra.mxu0 0
  %821 = vmatprep.subr.bf16.mxu0 0
  %822 = vmatpush2.bf16.msra.mxu0 0
  %823 = vmatprep.subr.bf16.mxu0 0
  %824 = vmatpush2.bf16.msra.mxu0 0
  %825 = vmatprep.subr.bf16.mxu0 0
  %826 = vmatpush2.bf16.msra.mxu0 0
  %827 = vmatprep.subr.bf16.mxu0 0
  %828 = vmatpush2.bf16.msra.mxu0 0
  %829 = vmatprep.subr.bf16.mxu0 0
  %830 = vmatpush2.bf16.msra.mxu0 0
  %831 = vmatprep.subr.bf16.mxu0 0
  %832 = vmatpush2.bf16.msra.mxu0 0
  %833 = vmatprep.mubr.bf16.mxu0 0
  %834 = vmatmul.mubr.bf16.gmra.mxu0 %v426
  %v835 = vpop.f32.mrf.mxu0
  %v836 = vadd.f32 %v398, %v835
  %v837 = vpop.f32.mrf.mxu0
  %v838 = vadd.f32 %v398, %v837
  %v839 = vpop.f32.mrf.mxu0
  %v840 = vadd.f32 %v403, %v839
  %v841 = vpop.f32.mrf.mxu0
  %v842 = vadd.f32 %v403, %v841
  %843 = vmatprep.mubr.bf16.mxu0 0
  %844 = vmatmul.mubr.bf16.gmra.mxu0 %v429
  %v845 = vpop.f32.mrf.mxu0
  %v846 = vadd.f32 %v408, %v845
  %v847 = vpop.f32.mrf.mxu0
  %v848 = vadd.f32 %v408, %v847
  %v849 = vpop.f32.mrf.mxu0
  %v850 = vadd.f32 %v413, %v849
  %v851 = vpop.f32.mrf.mxu0
  %v852 = vadd.f32 %v413, %v851
  %853 = vdwg.mxu0
  %v854 = vmax.f32 %v836, 0.0
  %v855 = vmax.f32 %v838, 0.0
  %v856 = vmax.f32 %v840, 0.0
  %v857 = vmax.f32 %v842, 0.0
  %v858 = vmax.f32 %v846, 0.0
  %v859 = vmax.f32 %v848, 0.0
  %v860 = vmax.f32 %v850, 0.0
  %v861 = vmax.f32 %v852, 0.0
  %v862 = vpack.c.bf16 %v856, %v854
  %v863 = vpack.c.bf16 %v857, %v855
  %v864 = vpack.c.bf16 %v860, %v858
  %v865 = vpack.c.bf16 %v861, %v859
  %866 = vmatprep.subr.bf16.mxu0 0
  %867 = vmatpush1.bf16.msra.mxu0 0
  %868 = vmatprep.subr.bf16.mxu0 0
  %869 = vmatpush1.bf16.msra.mxu0 0
  %870 = vmatprep.subr.bf16.mxu0 0
  %871 = vmatpush1.bf16.msra.mxu0 0
  %872 = vmatprep.subr.bf16.mxu0 0
  %873 = vmatpush1.bf16.msra.mxu0 0
  %874 = vmatprep.subr.bf16.mxu0 0
  %875 = vmatpush1.bf16.msra.mxu0 0
  %876 = vmatprep.subr.bf16.mxu0 0
  %877 = vmatpush1.bf16.msra.mxu0 0
  %878 = vmatprep.subr.bf16.mxu0 %v865
  %879 = vmatpush1.bf16.msra.mxu0 %v864
  %880 = vmatprep.subr.bf16.mxu0 %v863
  %881 = vmatpush1.bf16.msra.mxu0 %v862
  %882 = vmatprep.subr.bf16.mxu0 0
  %883 = vmatpush2.bf16.msra.mxu0 0
  %884 = vmatprep.subr.bf16.mxu0 0
  %885 = vmatpush2.bf16.msra.mxu0 0
  %886 = vmatprep.subr.bf16.mxu0 0
  %887 = vmatpush2.bf16.msra.mxu0 0
  %888 = vmatprep.subr.bf16.mxu0 0
  %889 = vmatpush2.bf16.msra.mxu0 0
  %890 = vmatprep.subr.bf16.mxu0 0
  %891 = vmatpush2.bf16.msra.mxu0 0
  %892 = vmatprep.subr.bf16.mxu0 0
  %893 = vmatpush2.bf16.msra.mxu0 0
  %894 = vmatprep.subr.bf16.mxu0 0
  %895 = vmatpush2.bf16.msra.mxu0 0
  %896 = vmatprep.subr.bf16.mxu0 0
  %897 = vmatpush2.bf16.msra.mxu0 0
  %898 = vmatprep.mubr.bf16.mxu0 0
  %899 = vmatmul.mubr.bf16.gmra.mxu0 %v527
  %v900 = vpop.f32.mrf.mxu0
  %v901 = vadd.f32 %v499, %v900
  %v902 = vpop.f32.mrf.mxu0
  %v903 = vadd.f32 %v499, %v902
  %v904 = vpop.f32.mrf.mxu0
  %v905 = vadd.f32 %v504, %v904
  %v906 = vpop.f32.mrf.mxu0
  %v907 = vadd.f32 %v504, %v906
  %908 = vmatprep.mubr.bf16.mxu0 0
  %909 = vmatmul.mubr.bf16.gmra.mxu0 %v530
  %v910 = vpop.f32.mrf.mxu0
  %v911 = vadd.f32 %v509, %v910
  %v912 = vpop.f32.mrf.mxu0
  %v913 = vadd.f32 %v509, %v912
  %v914 = vpop.f32.mrf.mxu0
  %v915 = vadd.f32 %v514, %v914
  %v916 = vpop.f32.mrf.mxu0
  %v917 = vadd.f32 %v514, %v916
  %918 = vdwg.mxu0
  %s919 = scalar_lea.vmem %s11, 16
  %920 = vst [vmem:[%s919] sm:$0xff] %v901
  %921 = vst [vmem:[%s919 + $0x8] sm:$0xff] %v903
  %922 = vst [vmem:[%s919 + $0x20] sm:$0xff] %v905
  %923 = vst [vmem:[%s919 + $0x28] sm:$0xff] %v907
  %924 = vst [vmem:[%s919 + $0x40] sm:$0xff] %v911
  %925 = vst [vmem:[%s919 + $0x48] sm:$0xff] %v913
  %926 = vst [vmem:[%s919 + $0x60] sm:$0xff] %v915
  %927 = vst [vmem:[%s919 + $0x68] sm:$0xff] %v917
  // Predicated region
  $region46: #{dual_projection_net.2} parent=0 // pred_check
    _
  $region47: #{dual_projection_net.2} parent=0 // pred_check_branch
    %929 = sbr.rel (0) target = $region49
  $region48: #{dual_projection_net.2} parent=0 // pred_region
    _
  $region49: #{dual_projection_net.2} parent=0 // pred_fallthru
    _
  // Predicated region
  $region50: #{dual_projection_net.2} parent=0 // pred_check
    _
  $region51: #{dual_projection_net.2} parent=0 // pred_check_branch
    %931 = sbr.rel (0) target = $region53
  $region52: #{dual_projection_net.2} parent=0 // pred_region
    _
  $region53: #{dual_projection_net.2} parent=0 // pred_fallthru
    _

</llo_original>
